<compile_context>
chip_gen: v6e
topology: v6e:2x2x1
jax: 0.10.0
libtpu: 0.0.40
codegen_flags: <defaults>
</compile_context>

<pallas_src>
import functools

import jax
import jax.numpy as jnp
from jax.experimental import pallas as pl
from jax.experimental.pallas import tpu as pltpu


def _se_kernel(x_ref, w1_ref, b1_ref, w2_ref, b2_ref, o_ref, *, use_mxu):
    # x_ref : (Bb, C, HW)  block of batch elements, lane-dense spatial axis
    # w1_ref: (Cr, C)      conv1 weight (1x1 conv == matvec), f32
    # b1_ref: (1, Cr)      f32
    # w2_ref: (C, Cr)      conv2 weight, f32
    # b2_ref: (1, C)       f32
    x = x_ref[...]                                         # input dtype, no upcast

    # Global max pool over the flattened spatial axis; only the tiny pooled
    # tensor is promoted to f32 (no full-slab f32 temporary).
    m = jnp.max(x, axis=-1).astype(jnp.float32)            # (Bb, C)

    w1 = w1_ref[...].astype(jnp.float32)
    b1 = b1_ref[...].astype(jnp.float32)
    w2 = w2_ref[...].astype(jnp.float32)
    b2 = b2_ref[...].astype(jnp.float32)

    if use_mxu:
        # Real ERANN channel counts: two small MXU matmuls per grid step.
        h = jax.lax.dot_general(m, w1, (((1,), (1,)), ((), ())),
                                preferred_element_type=jnp.float32)   # (Bb, Cr)
        h = jnp.maximum(h + b1, 0.0)
        z = jax.lax.dot_general(h, w2, (((1,), (1,)), ((), ())),
                                preferred_element_type=jnp.float32)   # (Bb, C)
    else:
        # Tiny C (demo): keep the N=1 matvec on the VPU/XLU, no MXU
        # fill/drain/FIFO-pop overhead.
        h = jnp.sum(m[:, None, :] * w1[None, :, :], axis=-1)          # (Bb, Cr)
        h = jnp.maximum(h + b1, 0.0)
        z = jnp.sum(h[:, None, :] * w2[None, :, :], axis=-1)          # (Bb, C)

    scale = jax.nn.sigmoid(z + b2)                         # (Bb, C) f32

    # Channel-wise rescale, broadcast over the spatial (lane) axis, in the
    # input dtype (no full-slab f32 product).
    o_ref[...] = (x * scale.astype(x.dtype)[:, :, None]).astype(o_ref.dtype)


def _vmem_capacity_bytes():
    """Physical per-core VMEM; conservative (v7x = 64 MiB) if query fails."""
    try:
        cap = getattr(pltpu.get_tpu_info(), "vmem_capacity_bytes", None)
        if cap:
            return int(cap)
    except Exception:
        pass
    return 64 * 1024 * 1024


def se_block(x, w1, b1, w2, b2, *,
             vmem_limit_bytes=None, vmem_block_budget_bytes=None):
    """x: (B, C, H, W); w1: (Cr, C); b1: (Cr,); w2: (C, Cr); b2: (C,)."""
    B, C, H, W = x.shape
    Cr = w1.shape[0]
    HW = H * W
    itemsize = jnp.dtype(x.dtype).itemsize

    # ---- generation-aware VMEM budgets --------------------------------------
    vmem_cap = _vmem_capacity_bytes()            # 128 MiB v5e/v6e, 64 MiB v7x
    if vmem_limit_bytes is None:
        # ~75% of physical VMEM, capped at 100 MiB: ~96 MiB on v5e/v6e (raises
        # v5e's 16 MiB scoped default), ~48 MiB on v7x's 64 MiB per-TC VMEM.
        vmem_limit_bytes = min(int(vmem_cap) * 3 // 4, 100 * 1024 * 1024)
    if vmem_block_budget_bytes is None:
        # ~80% of the scoped limit for the double-buffered x/out slabs; the
        # rest is headroom for weights, biases and compiler scratch.
        vmem_block_budget_bytes = vmem_limit_bytes * 4 // 5

    # ---- batch-block sizing (honest footprint: no hidden f32 slab) ----------
    slab_bytes = C * HW * itemsize               # one batch element, one copy
    per_batch_bytes = 2 * 2 * slab_bytes         # 2 buffers x (in + out)
    bb = max(1, min(B, vmem_block_budget_bytes // max(1, per_batch_bytes)))

    # Prefer >= 2 grid steps (feeds both v7x TensorCores, keeps the DMA
    # pipeline overlapped), but never shrink blocks below ~1 MiB to get them.
    MIN_BLOCK_BYTES = 1 << 20
    half = pl.cdiv(B, 2)
    if B >= 2 and half * slab_bytes >= MIN_BLOCK_BYTES:
        bb = min(bb, half)
    # Soft preference for an even step count (balanced across v7x's 2 TCs).
    steps = pl.cdiv(B, bb)
    if steps > 1 and steps % 2 == 1:
        bb_even = pl.cdiv(B, steps + 1)
        if bb_even * slab_bytes >= MIN_BLOCK_BYTES:
            bb = bb_even
    grid = (pl.cdiv(B, bb),)                     # cdiv grid: no divisor collapse

    x_flat = x.reshape(B, C, HW)
    w1_f = w1.astype(jnp.float32)
    w2_f = w2.astype(jnp.float32)
    b1_2d = b1.reshape(1, Cr).astype(jnp.float32)
    b2_2d = b2.reshape(1, C).astype(jnp.float32)

    use_mxu = (C >= 128 and Cr >= 8)             # real ERANN sizes -> MXU path
    kernel = functools.partial(_se_kernel, use_mxu=use_mxu)

    cost = pl.CostEstimate(
        flops=2 * B * C * HW + 4 * B * C * Cr,   # max-pool + rescale + tiny MLP
        transcendentals=B * C,                   # sigmoid
        bytes_accessed=2 * B * C * HW * itemsize + (2 * C * Cr + C + Cr) * 4,
    )

    out_flat = pl.pallas_call(
        kernel,
        out_shape=jax.ShapeDtypeStruct((B, C, HW), x.dtype),
        grid_spec=pltpu.PrefetchScalarGridSpec(
            num_scalar_prefetch=0,
            grid=grid,
            in_specs=[
                pl.BlockSpec((bb, C, HW), lambda i: (i, 0, 0)),
                pl.BlockSpec((Cr, C), lambda i: (0, 0)),   # constant: DMA'd once
                pl.BlockSpec((1, Cr), lambda i: (0, 0)),
                pl.BlockSpec((C, Cr), lambda i: (0, 0)),
                pl.BlockSpec((1, C), lambda i: (0, 0)),
            ],
            out_specs=pl.BlockSpec((bb, C, HW), lambda i: (i, 0, 0)),
        ),
        compiler_params=pltpu.CompilerParams(
            dimension_semantics=("parallel",),
            vmem_limit_bytes=int(vmem_limit_bytes),
        ),
        cost_estimate=cost,
    )(x_flat, w1_f, b1_2d, w2_f, b2_2d)

    return out_flat.reshape(B, C, H, W)


def se_block_ref(x, w1, b1, w2, b2):
    """Pure-JAX reference matching the PyTorch module (full-precision matmuls)."""
    m = jnp.max(x, axis=(2, 3))                                        # (B, C)
    h = jnp.einsum("bc,rc->br", m, w1,
                   precision=jax.lax.Precision.HIGHEST) + b1           # (B, Cr)
    h = jnp.maximum(h, 0.0)
    z = jnp.einsum("br,cr->bc", h, w2,
                   precision=jax.lax.Precision.HIGHEST) + b2           # (B, C)
    s = jax.nn.sigmoid(z)
    return x * s[:, :, None, None]


if __name__ == "__main__":
    # Small shapes consistent with the module: in_channels=16, reduction=8.
    B, C, H, W = 2, 16, 16, 16
    reduction = 8
    Cr = C // reduction

    key = jax.random.PRNGKey(0)
    kx, kw1, kb1, kw2, kb2 = jax.random.split(key, 5)

    x = jax.random.normal(kx, (B, C, H, W), dtype=jnp.float32)
    # Conv2d(C, Cr, 1) weight is (Cr, C, 1, 1) -> matrix (Cr, C); bias (Cr,)
    w1 = jax.random.normal(kw1, (Cr, C), dtype=jnp.float32) * 0.2
    b1 = jax.random.normal(kb1, (Cr,), dtype=jnp.float32) * 0.1
    # Conv2d(Cr, C, 1) weight is (C, Cr, 1, 1) -> matrix (C, Cr); bias (C,)
    w2 = jax.random.normal(kw2, (C, Cr), dtype=jnp.float32) * 0.2
    b2 = jax.random.normal(kb2, (C,), dtype=jnp.float32) * 0.1

    out = se_block(x, w1, b1, w2, b2)
    out = jax.block_until_ready(out)

    ref = se_block_ref(x, w1, b1, w2, b2)
    assert out.shape == (B, C, H, W)
    assert jnp.allclose(out, ref, atol=1e-5, rtol=1e-5), "mismatch vs reference"

    print("KERNEL_OK")
</pallas_src>

<mosaic_0001>
module attributes {stable_mosaic.version = 11 : i64} {
  func.func @_se_kernel(%arg0: i32, %arg1: memref<2x16x256xf32, #tpu.memory_space<vmem>>, %arg2: memref<2x16xf32, #tpu.memory_space<vmem>>, %arg3: memref<1x2xf32, #tpu.memory_space<vmem>>, %arg4: memref<16x2xf32, #tpu.memory_space<vmem>>, %arg5: memref<1x16xf32, #tpu.memory_space<vmem>>, %arg6: memref<2x16x256xf32, #tpu.memory_space<vmem>>) attributes {dimension_semantics = [#tpu.dimension_semantics<parallel>], iteration_bounds = array<i64: 1>, scalar_prefetch = 0 : i64, scratch_operands = 0 : i64, tpu.core_type = #tpu.core_type<tc>, window_params = [{transform_indices = @transform_0, window_bounds = array<i64: 2, 16, 256>}, {pipeline_mode = #tpu.pipeline_mode<synchronous>, transform_indices = @transform_1, window_bounds = array<i64: 2, 16>}, {pipeline_mode = #tpu.pipeline_mode<synchronous>, transform_indices = @transform_2, window_bounds = array<i64: 1, 2>}, {pipeline_mode = #tpu.pipeline_mode<synchronous>, transform_indices = @transform_3, window_bounds = array<i64: 16, 2>}, {pipeline_mode = #tpu.pipeline_mode<synchronous>, transform_indices = @transform_4, window_bounds = array<i64: 1, 16>}, {transform_indices = @transform_5, window_bounds = array<i64: 2, 16, 256>}]} {
    %c0 = arith.constant 0 : index
    %c0_0 = arith.constant 0 : index
    %c0_1 = arith.constant 0 : index
    %0 = vector.load %arg1[%c0, %c0_0, %c0_1] : memref<2x16x256xf32, #tpu.memory_space<vmem>>, vector<2x16x256xf32>
    %cst = arith.constant dense<0xFF800000> : vector<2x16xf32>
    %1 = vector.multi_reduction <maximumf>, %0, %cst [2] : vector<2x16x256xf32> to vector<2x16xf32>
    %c0_2 = arith.constant 0 : index
    %c0_3 = arith.constant 0 : index
    %2 = vector.load %arg2[%c0_2, %c0_3] : memref<2x16xf32, #tpu.memory_space<vmem>>, vector<2x16xf32>
    %c0_4 = arith.constant 0 : index
    %c0_5 = arith.constant 0 : index
    %3 = vector.load %arg3[%c0_4, %c0_5] : memref<1x2xf32, #tpu.memory_space<vmem>>, vector<1x2xf32>
    %c0_6 = arith.constant 0 : index
    %c0_7 = arith.constant 0 : index
    %4 = vector.load %arg4[%c0_6, %c0_7] : memref<16x2xf32, #tpu.memory_space<vmem>>, vector<16x2xf32>
    %c0_8 = arith.constant 0 : index
    %c0_9 = arith.constant 0 : index
    %5 = vector.load %arg5[%c0_8, %c0_9] : memref<1x16xf32, #tpu.memory_space<vmem>>, vector<1x16xf32>
    %6 = vector.shape_cast %1 : vector<2x16xf32> to vector<2x1x16xf32>
    %7 = vector.shape_cast %2 : vector<2x16xf32> to vector<1x2x16xf32>
    %8 = vector.broadcast %6 : vector<2x1x16xf32> to vector<2x2x16xf32>
    %9 = vector.broadcast %7 : vector<1x2x16xf32> to vector<2x2x16xf32>
    %10 = arith.mulf %8, %9 : vector<2x2x16xf32>
    %cst_10 = arith.constant dense<0.000000e+00> : vector<2x2xf32>
    %11 = vector.multi_reduction <add>, %10, %cst_10 [2] : vector<2x2x16xf32> to vector<2x2xf32>
    %12 = vector.broadcast %3 : vector<1x2xf32> to vector<2x2xf32>
    %13 = arith.addf %11, %12 : vector<2x2xf32>
    %cst_11 = arith.constant 0.000000e+00 : f32
    %14 = vector.broadcast %cst_11 : f32 to vector<2x2xf32>
    %15 = arith.maximumf %13, %14 : vector<2x2xf32>
    %16 = vector.shape_cast %15 : vector<2x2xf32> to vector<2x1x2xf32>
    %17 = vector.shape_cast %4 : vector<16x2xf32> to vector<1x16x2xf32>
    %18 = vector.broadcast %16 : vector<2x1x2xf32> to vector<2x16x2xf32>
    %19 = vector.broadcast %17 : vector<1x16x2xf32> to vector<2x16x2xf32>
    %20 = arith.mulf %18, %19 : vector<2x16x2xf32>
    %cst_12 = arith.constant dense<0.000000e+00> : vector<2x16xf32>
    %21 = vector.multi_reduction <add>, %20, %cst_12 [2] : vector<2x16x2xf32> to vector<2x16xf32>
    %22 = vector.broadcast %5 : vector<1x16xf32> to vector<2x16xf32>
    %23 = arith.addf %21, %22 : vector<2x16xf32>
    %24 = arith.negf %23 : vector<2x16xf32>
    %25 = math.exp %24 : vector<2x16xf32>
    %cst_13 = arith.constant 1.000000e+00 : f32
    %26 = vector.broadcast %cst_13 : f32 to vector<2x16xf32>
    %27 = arith.addf %26, %25 : vector<2x16xf32>
    %28 = arith.divf %26, %27 : vector<2x16xf32>
    %29 = vector.shape_cast %28 : vector<2x16xf32> to vector<2x16x1xf32>
    %30 = vector.broadcast %29 : vector<2x16x1xf32> to vector<2x16x256xf32>
    %31 = arith.mulf %0, %30 : vector<2x16x256xf32>
    %c0_14 = arith.constant 0 : index
    %c0_15 = arith.constant 0 : index
    %c0_16 = arith.constant 0 : index
    %32 = vector.load %arg6[%c0_14, %c0_15, %c0_16] : memref<2x16x256xf32, #tpu.memory_space<vmem>>, vector<2x16x256xf32>
    tpu.vector_store %arg6[%c0_14, %c0_15, %c0_16], %31 {strides = array<i32>} : memref<2x16x256xf32, #tpu.memory_space<vmem>>, vector<2x16x256xf32>,
    return
  }
  func.func @transform_0(%arg0: i32) -> (i32, i32, i32) {
    %c0_i32 = arith.constant 0 : i32
    %c0_i32_0 = arith.constant 0 : i32
    %c0_i32_1 = arith.constant 0 : i32
    return %arg0, %c0_i32, %c0_i32_0 : i32, i32, i32
  }
  func.func @transform_1(%arg0: i32) -> (i32, i32) {
    %c0_i32 = arith.constant 0 : i32
    %c0_i32_0 = arith.constant 0 : i32
    %c0_i32_1 = arith.constant 0 : i32
    return %c0_i32, %c0_i32_0 : i32, i32
  }
  func.func @transform_2(%arg0: i32) -> (i32, i32) {
    %c0_i32 = arith.constant 0 : i32
    %c0_i32_0 = arith.constant 0 : i32
    %c0_i32_1 = arith.constant 0 : i32
    return %c0_i32, %c0_i32_0 : i32, i32
  }
  func.func @transform_3(%arg0: i32) -> (i32, i32) {
    %c0_i32 = arith.constant 0 : i32
    %c0_i32_0 = arith.constant 0 : i32
    %c0_i32_1 = arith.constant 0 : i32
    return %c0_i32, %c0_i32_0 : i32, i32
  }
  func.func @transform_4(%arg0: i32) -> (i32, i32) {
    %c0_i32 = arith.constant 0 : i32
    %c0_i32_0 = arith.constant 0 : i32
    %c0_i32_1 = arith.constant 0 : i32
    return %c0_i32, %c0_i32_0 : i32, i32
  }
  func.func @transform_5(%arg0: i32) -> (i32, i32, i32) {
    %c0_i32 = arith.constant 0 : i32
    %c0_i32_0 = arith.constant 0 : i32
    %c0_i32_1 = arith.constant 0 : i32
    return %arg0, %c0_i32, %c0_i32_0 : i32, i32, i32
  }
}

</mosaic_0001>

<llo_original>
// kernel: tpu_custom_call.1
$region0: #{tpu_custom_call.1}
  #allocation0 [shape = 'u32[]', space=smem, size = 0x4, offset = 0x4, fixed_abs, tag = 'smem constant byte address 0x4 - core index']
  #allocation1 [shape = 'u32[144,128]{1,0:T(1,128)}', space=vmem, size = 0x12000, scoped, tag = 'internal scratch']
  %s0 = inlined_call_operand.hbm [shape: f32[2,16,256], index: 0, kind: input, shape index: {}]
  %s1 = inlined_call_operand.vmem [shape: f32[2,16], index: 1, kind: input, shape index: {}]
  %s2 = inlined_call_operand.vmem [shape: f32[1,2], index: 2, kind: input, shape index: {}]
  %s3 = inlined_call_operand.vmem [shape: f32[16,2], index: 3, kind: input, shape index: {}]
  %s4 = inlined_call_operand.vmem [shape: f32[1,16], index: 4, kind: input, shape index: {}]
  %s5 = inlined_call_operand.hbm [shape: f32[2,16,256], index: 5, kind: output, shape index: {}]
  %s6 = sld [smem:[#allocation0]]
  $region34: #{tpu_custom_call.1} parent=0
    _
  %s8 = ssub.s32 1, %s6
  %s9 = scalar_select 0, %s8, %s6
  $region1: #{tpu_custom_call.1} parent=0
    #allocation2 [shape = 'u8[32768]{0}', space=vmem, size = 0x8000, scoped, tag = 'input window, operand 0, single buffered']
    #allocation3 [shape = 's32[1]{0}', space=sflag, size = 0x4, scoped, tag = 'scoped memory for tpu_custom_call.1']
    #allocation4 [shape = 's32[1]{0}', space=sflag, size = 0x4, scoped, tag = 'scoped memory for tpu_custom_call.1']
    #allocation5 [shape = 'u8[32768]{0}', space=vmem, size = 0x8000, scoped, tag = 'output window, operand 0, single buffered']
    %10 = vsyncpa [#allocation3], 0
    %11 = vsyncpa [#allocation4], 0
    // Predicated region
    $region2: #{tpu_custom_call.1} parent=1 // pred_check
      _
    $region3: #{tpu_custom_call.1} parent=1 // pred_check_branch
      %13 = sbr.rel (0) target = $region5
    $region4: #{tpu_custom_call.1} parent=1 // pred_region
      %s15 = ssub.s32 1024, 1024
      %16 = vsyncadd [#allocation3], %s15
      %s17 = sshll.u32 [#allocation2], 4
      %s18 = int_to_ptr.vmem [resolvable:$true] %s17
      %23 = dma.hbm_to_vmem [thread:$0]  %s0, 1024, %s18, [#allocation3], 256, 256, 16
    $region5: #{tpu_custom_call.1} parent=1 // pred_fallthru
      _
    // Predicated region
    $region6: #{tpu_custom_call.1} parent=1 // pred_check
      _
    $region7: #{tpu_custom_call.1} parent=1 // pred_check_branch
      %25 = sbr.rel (0) target = $region9
    $region8: #{tpu_custom_call.1} parent=1 // pred_region
      _
    $region9: #{tpu_custom_call.1} parent=1 // pred_fallthru
      _
    // Predicated region
    $region10: #{tpu_custom_call.1} parent=1 // pred_check
      _
    $region11: #{tpu_custom_call.1} parent=1 // pred_check_branch
      %27 = sbr.rel (0) target = $region13
    $region12: #{tpu_custom_call.1} parent=1 // pred_region
      _
    $region13: #{tpu_custom_call.1} parent=1 // pred_fallthru
      _
    // Predicated region
    $region14: #{tpu_custom_call.1} parent=1 // pred_check
      _
    $region15: #{tpu_custom_call.1} parent=1 // pred_check_branch
      %29 = sbr.rel (0) target = $region17
    $region16: #{tpu_custom_call.1} parent=1 // pred_region
      _
    $region17: #{tpu_custom_call.1} parent=1 // pred_fallthru
      _
    // Predicated region
    $region18: #{tpu_custom_call.1} parent=1 // pred_check
      _
    $region19: #{tpu_custom_call.1} parent=1 // pred_check_branch
      %31 = sbr.rel (0) target = $region21
    $region20: #{tpu_custom_call.1} parent=1 // pred_region
      _
    $region21: #{tpu_custom_call.1} parent=1 // pred_fallthru
      _
    // Predicated region
    $region22: #{tpu_custom_call.1} parent=1 // pred_check
      _
    $region23: #{tpu_custom_call.1} parent=1 // pred_check_branch
      %33 = sbr.rel (0) target = $region25
    $region24: #{tpu_custom_call.1} parent=1 // pred_region
      %34 = dma.done [#allocation3], 1024
    $region25: #{tpu_custom_call.1} parent=1 // pred_fallthru
      _
    %v35 = vld [vmem:[#allocation2] sm:$0xff]
    %v36 = vld [vmem:[#allocation2 + $0x8] sm:$0xff]
    %v37 = vld [vmem:[#allocation2 + $0x10] sm:$0xff]
    %v38 = vld [vmem:[#allocation2 + $0x18] sm:$0xff]
    %v39 = vld [vmem:[#allocation2 + $0x20] sm:$0xff]
    %v40 = vld [vmem:[#allocation2 + $0x28] sm:$0xff]
    %v41 = vld [vmem:[#allocation2 + $0x30] sm:$0xff]
    %v42 = vld [vmem:[#allocation2 + $0x38] sm:$0xff]
    %v43 = vmax.f32 %v35, %v36
    %44 = vmax.xlane.f32.xlu0 %v43
    %v45 = vpop.xlane.xlu0 %44
    %v46 = vmax.f32 %v37, %v38
    %47 = vmax.xlane.f32.xlu0 %v46
    %v48 = vpop.xlane.xlu0 %47
    %v49 = vmax.f32 %v39, %v40
    %50 = vmax.xlane.f32.xlu0 %v49
    %v51 = vpop.xlane.xlu0 %50
    %v52 = vmax.f32 %v41, %v42
    %53 = vmax.xlane.f32.xlu0 %v52
    %v54 = vpop.xlane.xlu0 %53
    %v55 = vld [vmem:[%s1] sm:$0x3]
    %v56 = vld [vmem:[%s2] sm:$0x1]
    %v57 = vld [vmem:[%s3] sm:$0xff]
    %v58 = vld [vmem:[%s3 + $0x8] sm:$0xff]
    %v59 = vld [vmem:[%s4] sm:$0x1]
    %v61 = vlaneseq
    %v62 = vshrl.u32 %v61, 7
    %v63 = vsub.s32 0, %v62
    %v64 = vrot.slane %v55, %v63
    %66 = vbcast.lane.b32.xlu0 %v64, 256
    %v67 = vpop.permute.xlu0 %66
    %s69 = sor.u32 256, 8
    %70 = vbcast.lane.b32.xlu0 %v64, %s69
    %v71 = vpop.permute.xlu0 %70
    %v72 = vlaneseq
    %v73 = vshrl.u32 %v72, 7
    %v74 = vsub.s32 1, %v73
    %v75 = vrot.slane %v55, %v74
    %77 = vbcast.lane.b32.xlu0 %v75, 256
    %v78 = vpop.permute.xlu0 %77
    %s80 = sor.u32 256, 8
    %81 = vbcast.lane.b32.xlu0 %v75, %s80
    %v82 = vpop.permute.xlu0 %81
    %v87 = vmul.f32 %v45, %v67
    %v88 = vmul.f32 %v48, %v71
    %v89 = vmul.f32 %v45, %v78
    %v90 = vmul.f32 %v48, %v82
    %v91 = vmul.f32 %v51, %v67
    %v92 = vmul.f32 %v54, %v71
    %v93 = vmul.f32 %v51, %v78
    %v94 = vmul.f32 %v54, %v82
    %103 = vset.pattern.permute.xlu0 0
    %104 = vperm.xlu0 %103, %v87
    %v105 = vpop.permute.xlu0 %104
    %106 = vset.pattern.permute.xlu0 0
    %107 = vperm.xlu0 %106, %v88
    %v108 = vpop.permute.xlu0 %107
    %109 = vset.pattern.permute.xlu0 0
    %110 = vperm.xlu0 %109, %v89
    %v111 = vpop.permute.xlu0 %110
    %112 = vset.pattern.permute.xlu0 0
    %113 = vperm.xlu0 %112, %v90
    %v114 = vpop.permute.xlu0 %113
    %115 = vset.pattern.permute.xlu0 0
    %116 = vperm.xlu0 %115, %v91
    %v117 = vpop.permute.xlu0 %116
    %118 = vset.pattern.permute.xlu0 0
    %119 = vperm.xlu0 %118, %v92
    %v120 = vpop.permute.xlu0 %119
    %121 = vset.pattern.permute.xlu0 0
    %122 = vperm.xlu0 %121, %v93
    %v123 = vpop.permute.xlu0 %122
    %124 = vset.pattern.permute.xlu0 0
    %125 = vperm.xlu0 %124, %v94
    %v126 = vpop.permute.xlu0 %125
    %v127 = vlaneseq
    %v128 = vand.u32 %v127, 127
    %v129 = vlaneseq
    %v130 = vshrl.u32 %v129, 7
    %v131 = vsub.s32 %v128, %v130
    %v132 = vrot.slane %v105, %v131
    %v133 = vadd.s32 %v128, 4294967288
    %v134 = vlaneseq
    %v135 = vshrl.u32 %v134, 7
    %v136 = vsub.s32 %v133, %v135
    %v137 = vrot.slane %v108, %v136
    %vm138 = vcmask 130112
    %v139 = vsel %vm138, %v137, %v132
    %v140 = vlaneseq
    %v141 = vshrl.u32 %v140, 7
    %v142 = vsub.s32 %v128, %v141
    %v143 = vrot.slane %v111, %v142
    %v144 = vlaneseq
    %v145 = vshrl.u32 %v144, 7
    %v146 = vsub.s32 %v133, %v145
    %v147 = vrot.slane %v114, %v146
    %v148 = vsel %vm138, %v147, %v143
    %v149 = vlaneseq
    %v150 = vshrl.u32 %v149, 7
    %v151 = vsub.s32 %v128, %v150
    %v152 = vrot.slane %v117, %v151
    %v153 = vlaneseq
    %v154 = vshrl.u32 %v153, 7
    %v155 = vsub.s32 %v133, %v154
    %v156 = vrot.slane %v120, %v155
    %v157 = vsel %vm138, %v156, %v152
    %v158 = vlaneseq
    %v159 = vshrl.u32 %v158, 7
    %v160 = vsub.s32 %v128, %v159
    %v161 = vrot.slane %v123, %v160
    %v162 = vlaneseq
    %v163 = vshrl.u32 %v162, 7
    %v164 = vsub.s32 %v133, %v163
    %v165 = vrot.slane %v126, %v164
    %v166 = vsel %vm138, %v165, %v161
    %vm167 = vcmask 1041409
    %v168 = vsel %vm167, %v148, %v139
    %v169 = vsel %vm167, %v166, %v157
    %vm172 = vcmask 123904
    %v173 = vsel %vm172, %v168, 0.0
    %174 = vadd.xlane.f32.xlu0 %v173
    %v175 = vpop.xlane.xlu0 %174
    %v176 = vsel %vm172, %v169, 0.0
    %177 = vadd.xlane.f32.xlu0 %v176
    %v178 = vpop.xlane.xlu0 %177
    %v180 = vlaneseq
    %v181 = vshrl.u32 %v180, 7
    %v182 = vsub.s32 0, %v181
    %v183 = vrot.slane %v56, %v182
    %185 = vbcast.lane.b32.xlu0 %v183, 256
    %v186 = vpop.permute.xlu0 %185
    %v188 = vadd.f32 %v175, %v186
    %v189 = vadd.f32 %v178, %v186
    %v190 = vmax.f32 %v188, 0.0
    %v191 = vmax.f32 %v189, 0.0
    %v194 = vlaneseq
    %v195 = vshrl.u32 %v194, 7
    %v196 = vsub.s32 0, %v195
    %v197 = vrot.slane %v57, %v196
    %199 = vbcast.lane.b32.xlu0 %v197, 256
    %v200 = vpop.permute.xlu0 %199
    %v201 = vlaneseq
    %v202 = vshrl.u32 %v201, 7
    %v203 = vsub.s32 1, %v202
    %v204 = vrot.slane %v57, %v203
    %206 = vbcast.lane.b32.xlu0 %v204, 256
    %v207 = vpop.permute.xlu0 %206
    %v208 = vlaneseq
    %v209 = vshrl.u32 %v208, 7
    %v210 = vsub.s32 2, %v209
    %v211 = vrot.slane %v57, %v210
    %213 = vbcast.lane.b32.xlu0 %v211, 256
    %v214 = vpop.permute.xlu0 %213
    %v215 = vlaneseq
    %v216 = vshrl.u32 %v215, 7
    %v217 = vsub.s32 3, %v216
    %v218 = vrot.slane %v57, %v217
    %220 = vbcast.lane.b32.xlu0 %v218, 256
    %v221 = vpop.permute.xlu0 %220
    %v222 = vlaneseq
    %v223 = vshrl.u32 %v222, 7
    %v224 = vsub.s32 4, %v223
    %v225 = vrot.slane %v57, %v224
    %227 = vbcast.lane.b32.xlu0 %v225, 256
    %v228 = vpop.permute.xlu0 %227
    %v229 = vlaneseq
    %v230 = vshrl.u32 %v229, 7
    %v231 = vsub.s32 5, %v230
    %v232 = vrot.slane %v57, %v231
    %234 = vbcast.lane.b32.xlu0 %v232, 256
    %v235 = vpop.permute.xlu0 %234
    %v236 = vlaneseq
    %v237 = vshrl.u32 %v236, 7
    %v238 = vsub.s32 6, %v237
    %v239 = vrot.slane %v57, %v238
    %241 = vbcast.lane.b32.xlu0 %v239, 256
    %v242 = vpop.permute.xlu0 %241
    %v243 = vlaneseq
    %v244 = vshrl.u32 %v243, 7
    %v245 = vsub.s32 7, %v244
    %v246 = vrot.slane %v57, %v245
    %248 = vbcast.lane.b32.xlu0 %v246, 256
    %v249 = vpop.permute.xlu0 %248
    %v250 = vlaneseq
    %v251 = vshrl.u32 %v250, 7
    %v252 = vsub.s32 0, %v251
    %v253 = vrot.slane %v58, %v252
    %255 = vbcast.lane.b32.xlu0 %v253, 256
    %v256 = vpop.permute.xlu0 %255
    %v257 = vlaneseq
    %v258 = vshrl.u32 %v257, 7
    %v259 = vsub.s32 1, %v258
    %v260 = vrot.slane %v58, %v259
    %262 = vbcast.lane.b32.xlu0 %v260, 256
    %v263 = vpop.permute.xlu0 %262
    %v264 = vlaneseq
    %v265 = vshrl.u32 %v264, 7
    %v266 = vsub.s32 2, %v265
    %v267 = vrot.slane %v58, %v266
    %269 = vbcast.lane.b32.xlu0 %v267, 256
    %v270 = vpop.permute.xlu0 %269
    %v271 = vlaneseq
    %v272 = vshrl.u32 %v271, 7
    %v273 = vsub.s32 3, %v272
    %v274 = vrot.slane %v58, %v273
    %276 = vbcast.lane.b32.xlu0 %v274, 256
    %v277 = vpop.permute.xlu0 %276
    %v278 = vlaneseq
    %v279 = vshrl.u32 %v278, 7
    %v280 = vsub.s32 4, %v279
    %v281 = vrot.slane %v58, %v280
    %283 = vbcast.lane.b32.xlu0 %v281, 256
    %v284 = vpop.permute.xlu0 %283
    %v285 = vlaneseq
    %v286 = vshrl.u32 %v285, 7
    %v287 = vsub.s32 5, %v286
    %v288 = vrot.slane %v58, %v287
    %290 = vbcast.lane.b32.xlu0 %v288, 256
    %v291 = vpop.permute.xlu0 %290
    %v292 = vlaneseq
    %v293 = vshrl.u32 %v292, 7
    %v294 = vsub.s32 6, %v293
    %v295 = vrot.slane %v58, %v294
    %297 = vbcast.lane.b32.xlu0 %v295, 256
    %v298 = vpop.permute.xlu0 %297
    %v299 = vlaneseq
    %v300 = vshrl.u32 %v299, 7
    %v301 = vsub.s32 7, %v300
    %v302 = vrot.slane %v58, %v301
    %304 = vbcast.lane.b32.xlu0 %v302, 256
    %v305 = vpop.permute.xlu0 %304
    %v322 = vmul.f32 %v190, %v200
    %v323 = vmul.f32 %v190, %v207
    %v324 = vmul.f32 %v190, %v214
    %v325 = vmul.f32 %v190, %v221
    %v326 = vmul.f32 %v190, %v228
    %v327 = vmul.f32 %v190, %v235
    %v328 = vmul.f32 %v190, %v242
    %v329 = vmul.f32 %v190, %v249
    %v330 = vmul.f32 %v190, %v256
    %v331 = vmul.f32 %v190, %v263
    %v332 = vmul.f32 %v190, %v270
    %v333 = vmul.f32 %v190, %v277
    %v334 = vmul.f32 %v190, %v284
    %v335 = vmul.f32 %v190, %v291
    %v336 = vmul.f32 %v190, %v298
    %v337 = vmul.f32 %v190, %v305
    %v338 = vmul.f32 %v191, %v200
    %v339 = vmul.f32 %v191, %v207
    %v340 = vmul.f32 %v191, %v214
    %v341 = vmul.f32 %v191, %v221
    %v342 = vmul.f32 %v191, %v228
    %v343 = vmul.f32 %v191, %v235
    %v344 = vmul.f32 %v191, %v242
    %v345 = vmul.f32 %v191, %v249
    %v346 = vmul.f32 %v191, %v256
    %v347 = vmul.f32 %v191, %v263
    %v348 = vmul.f32 %v191, %v270
    %v349 = vmul.f32 %v191, %v277
    %v350 = vmul.f32 %v191, %v284
    %v351 = vmul.f32 %v191, %v291
    %v352 = vmul.f32 %v191, %v298
    %v353 = vmul.f32 %v191, %v305
    %386 = vset.pattern.permute.xlu0 0
    %387 = vperm.xlu0 %386, %v322
    %v388 = vpop.permute.xlu0 %387
    %389 = vset.pattern.permute.xlu0 0
    %390 = vperm.xlu0 %389, %v323
    %v391 = vpop.permute.xlu0 %390
    %392 = vset.pattern.permute.xlu0 0
    %393 = vperm.xlu0 %392, %v324
    %v394 = vpop.permute.xlu0 %393
    %395 = vset.pattern.permute.xlu0 0
    %396 = vperm.xlu0 %395, %v325
    %v397 = vpop.permute.xlu0 %396
    %398 = vset.pattern.permute.xlu0 0
    %399 = vperm.xlu0 %398, %v326
    %v400 = vpop.permute.xlu0 %399
    %401 = vset.pattern.permute.xlu0 0
    %402 = vperm.xlu0 %401, %v327
    %v403 = vpop.permute.xlu0 %402
    %404 = vset.pattern.permute.xlu0 0
    %405 = vperm.xlu0 %404, %v328
    %v406 = vpop.permute.xlu0 %405
    %407 = vset.pattern.permute.xlu0 0
    %408 = vperm.xlu0 %407, %v329
    %v409 = vpop.permute.xlu0 %408
    %410 = vset.pattern.permute.xlu0 0
    %411 = vperm.xlu0 %410, %v330
    %v412 = vpop.permute.xlu0 %411
    %413 = vset.pattern.permute.xlu0 0
    %414 = vperm.xlu0 %413, %v331
    %v415 = vpop.permute.xlu0 %414
    %416 = vset.pattern.permute.xlu0 0
    %417 = vperm.xlu0 %416, %v332
    %v418 = vpop.permute.xlu0 %417
    %419 = vset.pattern.permute.xlu0 0
    %420 = vperm.xlu0 %419, %v333
    %v421 = vpop.permute.xlu0 %420
    %422 = vset.pattern.permute.xlu0 0
    %423 = vperm.xlu0 %422, %v334
    %v424 = vpop.permute.xlu0 %423
    %425 = vset.pattern.permute.xlu0 0
    %426 = vperm.xlu0 %425, %v335
    %v427 = vpop.permute.xlu0 %426
    %428 = vset.pattern.permute.xlu0 0
    %429 = vperm.xlu0 %428, %v336
    %v430 = vpop.permute.xlu0 %429
    %431 = vset.pattern.permute.xlu0 0
    %432 = vperm.xlu0 %431, %v337
    %v433 = vpop.permute.xlu0 %432
    %434 = vset.pattern.permute.xlu0 0
    %435 = vperm.xlu0 %434, %v338
    %v436 = vpop.permute.xlu0 %435
    %437 = vset.pattern.permute.xlu0 0
    %438 = vperm.xlu0 %437, %v339
    %v439 = vpop.permute.xlu0 %438
    %440 = vset.pattern.permute.xlu0 0
    %441 = vperm.xlu0 %440, %v340
    %v442 = vpop.permute.xlu0 %441
    %443 = vset.pattern.permute.xlu0 0
    %444 = vperm.xlu0 %443, %v341
    %v445 = vpop.permute.xlu0 %444
    %446 = vset.pattern.permute.xlu0 0
    %447 = vperm.xlu0 %446, %v342
    %v448 = vpop.permute.xlu0 %447
    %449 = vset.pattern.permute.xlu0 0
    %450 = vperm.xlu0 %449, %v343
    %v451 = vpop.permute.xlu0 %450
    %452 = vset.pattern.permute.xlu0 0
    %453 = vperm.xlu0 %452, %v344
    %v454 = vpop.permute.xlu0 %453
    %455 = vset.pattern.permute.xlu0 0
    %456 = vperm.xlu0 %455, %v345
    %v457 = vpop.permute.xlu0 %456
    %458 = vset.pattern.permute.xlu0 0
    %459 = vperm.xlu0 %458, %v346
    %v460 = vpop.permute.xlu0 %459
    %461 = vset.pattern.permute.xlu0 0
    %462 = vperm.xlu0 %461, %v347
    %v463 = vpop.permute.xlu0 %462
    %464 = vset.pattern.permute.xlu0 0
    %465 = vperm.xlu0 %464, %v348
    %v466 = vpop.permute.xlu0 %465
    %467 = vset.pattern.permute.xlu0 0
    %468 = vperm.xlu0 %467, %v349
    %v469 = vpop.permute.xlu0 %468
    %470 = vset.pattern.permute.xlu0 0
    %471 = vperm.xlu0 %470, %v350
    %v472 = vpop.permute.xlu0 %471
    %473 = vset.pattern.permute.xlu0 0
    %474 = vperm.xlu0 %473, %v351
    %v475 = vpop.permute.xlu0 %474
    %476 = vset.pattern.permute.xlu0 0
    %477 = vperm.xlu0 %476, %v352
    %v478 = vpop.permute.xlu0 %477
    %479 = vset.pattern.permute.xlu0 0
    %480 = vperm.xlu0 %479, %v353
    %v481 = vpop.permute.xlu0 %480
    %v482 = vlaneseq
    %v483 = vshrl.u32 %v482, 7
    %v484 = vsub.s32 %v128, %v483
    %v485 = vrot.slane %v388, %v484
    %v486 = vlaneseq
    %v487 = vshrl.u32 %v486, 7
    %v488 = vsub.s32 %v128, %v487
    %v489 = vrot.slane %v391, %v488
    %v490 = vlaneseq
    %v491 = vshrl.u32 %v490, 7
    %v492 = vsub.s32 %v128, %v491
    %v493 = vrot.slane %v394, %v492
    %v494 = vlaneseq
    %v495 = vshrl.u32 %v494, 7
    %v496 = vsub.s32 %v128, %v495
    %v497 = vrot.slane %v397, %v496
    %v498 = vlaneseq
    %v499 = vshrl.u32 %v498, 7
    %v500 = vsub.s32 %v128, %v499
    %v501 = vrot.slane %v400, %v500
    %v502 = vlaneseq
    %v503 = vshrl.u32 %v502, 7
    %v504 = vsub.s32 %v128, %v503
    %v505 = vrot.slane %v403, %v504
    %v506 = vlaneseq
    %v507 = vshrl.u32 %v506, 7
    %v508 = vsub.s32 %v128, %v507
    %v509 = vrot.slane %v406, %v508
    %v510 = vlaneseq
    %v511 = vshrl.u32 %v510, 7
    %v512 = vsub.s32 %v128, %v511
    %v513 = vrot.slane %v409, %v512
    %v514 = vlaneseq
    %v515 = vshrl.u32 %v514, 7
    %v516 = vsub.s32 %v128, %v515
    %v517 = vrot.slane %v412, %v516
    %v518 = vlaneseq
    %v519 = vshrl.u32 %v518, 7
    %v520 = vsub.s32 %v128, %v519
    %v521 = vrot.slane %v415, %v520
    %v522 = vlaneseq
    %v523 = vshrl.u32 %v522, 7
    %v524 = vsub.s32 %v128, %v523
    %v525 = vrot.slane %v418, %v524
    %v526 = vlaneseq
    %v527 = vshrl.u32 %v526, 7
    %v528 = vsub.s32 %v128, %v527
    %v529 = vrot.slane %v421, %v528
    %v530 = vlaneseq
    %v531 = vshrl.u32 %v530, 7
    %v532 = vsub.s32 %v128, %v531
    %v533 = vrot.slane %v424, %v532
    %v534 = vlaneseq
    %v535 = vshrl.u32 %v534, 7
    %v536 = vsub.s32 %v128, %v535
    %v537 = vrot.slane %v427, %v536
    %v538 = vlaneseq
    %v539 = vshrl.u32 %v538, 7
    %v540 = vsub.s32 %v128, %v539
    %v541 = vrot.slane %v430, %v540
    %v542 = vlaneseq
    %v543 = vshrl.u32 %v542, 7
    %v544 = vsub.s32 %v128, %v543
    %v545 = vrot.slane %v433, %v544
    %v546 = vlaneseq
    %v547 = vshrl.u32 %v546, 7
    %v548 = vsub.s32 %v128, %v547
    %v549 = vrot.slane %v436, %v548
    %v550 = vlaneseq
    %v551 = vshrl.u32 %v550, 7
    %v552 = vsub.s32 %v128, %v551
    %v553 = vrot.slane %v439, %v552
    %v554 = vlaneseq
    %v555 = vshrl.u32 %v554, 7
    %v556 = vsub.s32 %v128, %v555
    %v557 = vrot.slane %v442, %v556
    %v558 = vlaneseq
    %v559 = vshrl.u32 %v558, 7
    %v560 = vsub.s32 %v128, %v559
    %v561 = vrot.slane %v445, %v560
    %v562 = vlaneseq
    %v563 = vshrl.u32 %v562, 7
    %v564 = vsub.s32 %v128, %v563
    %v565 = vrot.slane %v448, %v564
    %v566 = vlaneseq
    %v567 = vshrl.u32 %v566, 7
    %v568 = vsub.s32 %v128, %v567
    %v569 = vrot.slane %v451, %v568
    %v570 = vlaneseq
    %v571 = vshrl.u32 %v570, 7
    %v572 = vsub.s32 %v128, %v571
    %v573 = vrot.slane %v454, %v572
    %v574 = vlaneseq
    %v575 = vshrl.u32 %v574, 7
    %v576 = vsub.s32 %v128, %v575
    %v577 = vrot.slane %v457, %v576
    %v578 = vlaneseq
    %v579 = vshrl.u32 %v578, 7
    %v580 = vsub.s32 %v128, %v579
    %v581 = vrot.slane %v460, %v580
    %v582 = vlaneseq
    %v583 = vshrl.u32 %v582, 7
    %v584 = vsub.s32 %v128, %v583
    %v585 = vrot.slane %v463, %v584
    %v586 = vlaneseq
    %v587 = vshrl.u32 %v586, 7
    %v588 = vsub.s32 %v128, %v587
    %v589 = vrot.slane %v466, %v588
    %v590 = vlaneseq
    %v591 = vshrl.u32 %v590, 7
    %v592 = vsub.s32 %v128, %v591
    %v593 = vrot.slane %v469, %v592
    %v594 = vlaneseq
    %v595 = vshrl.u32 %v594, 7
    %v596 = vsub.s32 %v128, %v595
    %v597 = vrot.slane %v472, %v596
    %v598 = vlaneseq
    %v599 = vshrl.u32 %v598, 7
    %v600 = vsub.s32 %v128, %v599
    %v601 = vrot.slane %v475, %v600
    %v602 = vlaneseq
    %v603 = vshrl.u32 %v602, 7
    %v604 = vsub.s32 %v128, %v603
    %v605 = vrot.slane %v478, %v604
    %v606 = vlaneseq
    %v607 = vshrl.u32 %v606, 7
    %v608 = vsub.s32 %v128, %v607
    %v609 = vrot.slane %v481, %v608
    %v610 = vsel %vm167, %v489, %v485
    %vm611 = vcmask 1042434
    %v612 = vsel %vm611, %v493, %v610
    %vm613 = vcmask 1043459
    %v614 = vsel %vm613, %v497, %v612
    %vm615 = vcmask 1044484
    %v616 = vsel %vm615, %v501, %v614
    %vm617 = vcmask 1045509
    %v618 = vsel %vm617, %v505, %v616
    %vm619 = vcmask 1046534
    %v620 = vsel %vm619, %v509, %v618
    %vm621 = vcmask 1047559
    %v622 = vsel %vm621, %v513, %v620
    %v623 = vsel %vm167, %v521, %v517
    %v624 = vsel %vm611, %v525, %v623
    %v625 = vsel %vm613, %v529, %v624
    %v626 = vsel %vm615, %v533, %v625
    %v627 = vsel %vm617, %v537, %v626
    %v628 = vsel %vm619, %v541, %v627
    %v629 = vsel %vm621, %v545, %v628
    %v630 = vsel %vm167, %v553, %v549
    %v631 = vsel %vm611, %v557, %v630
    %v632 = vsel %vm613, %v561, %v631
    %v633 = vsel %vm615, %v565, %v632
    %v634 = vsel %vm617, %v569, %v633
    %v635 = vsel %vm619, %v573, %v634
    %v636 = vsel %vm621, %v577, %v635
    %v637 = vsel %vm167, %v585, %v581
    %v638 = vsel %vm611, %v589, %v637
    %v639 = vsel %vm613, %v593, %v638
    %v640 = vsel %vm615, %v597, %v639
    %v641 = vsel %vm617, %v601, %v640
    %v642 = vsel %vm619, %v605, %v641
    %v643 = vsel %vm621, %v609, %v642
    %vm648 = vcmask 15360
    %v649 = vsel %vm648, %v622, 0.0
    %650 = vadd.xlane.f32.xlu0 %v649
    %v651 = vpop.xlane.xlu0 %650
    %v652 = vsel %vm648, %v629, 0.0
    %653 = vadd.xlane.f32.xlu0 %v652
    %v654 = vpop.xlane.xlu0 %653
    %v655 = vsel %vm648, %v636, 0.0
    %656 = vadd.xlane.f32.xlu0 %v655
    %v657 = vpop.xlane.xlu0 %656
    %v658 = vsel %vm648, %v643, 0.0
    %659 = vadd.xlane.f32.xlu0 %v658
    %v660 = vpop.xlane.xlu0 %659
    %v662 = vlaneseq
    %v663 = vshrl.u32 %v662, 7
    %v664 = vsub.s32 0, %v663
    %v665 = vrot.slane %v59, %v664
    %667 = vbcast.lane.b32.xlu0 %v665, 256
    %v668 = vpop.permute.xlu0 %667
    %s670 = sor.u32 256, 8
    %671 = vbcast.lane.b32.xlu0 %v665, %s670
    %v672 = vpop.permute.xlu0 %671
    %v675 = vadd.f32 %v651, %v668
    %v676 = vadd.f32 %v654, %v672
    %v677 = vadd.f32 %v657, %v668
    %v678 = vadd.f32 %v660, %v672
    %v679 = vxor.u32 %v675, 2147483648
    %v680 = vxor.u32 %v676, 2147483648
    %v681 = vxor.u32 %v677, 2147483648
    %v682 = vxor.u32 %v678, 2147483648
    %v683 = vmul.f32 %v679, 1.442695
    %v684 = vpow.pop %v683
    %v685 = vmul.f32 %v680, 1.442695
    %v686 = vpow.pop %v685
    %v687 = vmul.f32 %v681, 1.442695
    %v688 = vpow.pop %v687
    %v689 = vmul.f32 %v682, 1.442695
    %v690 = vpow.pop %v689
    %v691 = vadd.f32 %v684, 1.0
    %v692 = vadd.f32 %v686, 1.0
    %v693 = vadd.f32 %v688, 1.0
    %v694 = vadd.f32 %v690, 1.0
    %v695 = vrcp.pop %v691
    %v696 = vmul.f32 1.0, %v695
    %v697 = vrcp.pop %v692
    %v698 = vmul.f32 1.0, %v697
    %v699 = vrcp.pop %v693
    %v700 = vmul.f32 1.0, %v699
    %v701 = vrcp.pop %v694
    %v702 = vmul.f32 1.0, %v701
    %704 = vset.pattern.permute.xlu0 0
    %705 = vperm.xlu0 %704, %v696
    %v706 = vpop.permute.xlu0 %705
    %709 = vset.pattern.permute.xlu0 0
    %710 = vperm.xlu0 %709, %v698
    %v711 = vpop.permute.xlu0 %710
    %714 = vset.pattern.permute.xlu0 0
    %715 = vperm.xlu0 %714, %v700
    %v716 = vpop.permute.xlu0 %715
    %719 = vset.pattern.permute.xlu0 0
    %720 = vperm.xlu0 %719, %v702
    %v721 = vpop.permute.xlu0 %720
    %v723 = vmul.f32 %v35, %v706
    %v724 = vmul.f32 %v36, %v706
    %v725 = vmul.f32 %v37, %v711
    %v726 = vmul.f32 %v38, %v711
    %v727 = vmul.f32 %v39, %v716
    %v728 = vmul.f32 %v40, %v716
    %v729 = vmul.f32 %v41, %v721
    %v730 = vmul.f32 %v42, %v721
    %731 = vst [vmem:[#allocation5] sm:$0xff] %v723
    %732 = vst [vmem:[#allocation5 + $0x8] sm:$0xff] %v724
    %733 = vst [vmem:[#allocation5 + $0x10] sm:$0xff] %v725
    %734 = vst [vmem:[#allocation5 + $0x18] sm:$0xff] %v726
    %735 = vst [vmem:[#allocation5 + $0x20] sm:$0xff] %v727
    %736 = vst [vmem:[#allocation5 + $0x28] sm:$0xff] %v728
    %737 = vst [vmem:[#allocation5 + $0x30] sm:$0xff] %v729
    %738 = vst [vmem:[#allocation5 + $0x38] sm:$0xff] %v730
    // Predicated region
    $region26: #{tpu_custom_call.1} parent=1 // pred_check
      _
    $region27: #{tpu_custom_call.1} parent=1 // pred_check_branch
      %740 = sbr.rel (0) target = $region29
    $region28: #{tpu_custom_call.1} parent=1 // pred_region
      %s742 = ssub.s32 1024, 1024
      %743 = vsyncadd [#allocation4], %s742
      %s744 = sshll.u32 [#allocation5], 4
      %s745 = int_to_ptr.vmem [resolvable:$true] %s744
      %750 = dma.vmem_to_hbm [thread:$0]  %s745, 1024, %s5, [#allocation4], 256, 256, 16
    $region29: #{tpu_custom_call.1} parent=1 // pred_fallthru
      _
    // Predicated region
    $region30: #{tpu_custom_call.1} parent=1 // pred_check
      _
    $region31: #{tpu_custom_call.1} parent=1 // pred_check_branch
      %752 = sbr.rel (0) target = $region33
    $region32: #{tpu_custom_call.1} parent=1 // pred_region
      %753 = dma.done [#allocation4], 1024
    $region33: #{tpu_custom_call.1} parent=1 // pred_fallthru
      _
    %754 = vsyncpa [#allocation3], 1
    %755 = vsyncpa [#allocation4], 1

</llo_original>
